<compile_context>
chip_gen: v7x
topology: tpu7x:2x2x1
jax: 0.10.0
libtpu: 0.0.40
codegen_flags: <defaults>
</compile_context>

<pallas_src>
import jax
import jax.numpy as jnp
from jax import lax
from jax.experimental import pallas as pl
from jax.experimental.pallas import tpu as pltpu


def _round_up(n, m):
    return ((n + m - 1) // m) * m


def _softplus(x):
    """Numerically stable softplus using only exp/log (EUP-friendly, stays in f32)."""
    return jnp.maximum(x, 0.0) + jnp.log(1.0 + jnp.exp(-jnp.abs(x)))


def _decoder_kernel(xa_ref, ra_ref,            # (G, TB, x_dim) / (G, TB, r_dim); G = 2 + neg
                    w1x_ref, w1r_ref,          # decode_fc Linear1, split over [x | r], (in, h)
                    w2_ref,                    # decode_fc Linear2, (h, out)
                    wedge_ref,                 # (3, out, out): [src_fc^T, dst_fc^T, out_fc rows]
                    bias_ref,                  # (4, max_dim): rows = b1, b2, bs, bd
                    bo_ref,                    # (2, 1): out_fc bias as a column
                    pred_ref):                 # (2*P, TB): rows = [means (P) ; sigmas (P)]
    G, TB, x_dim = xa_ref.shape
    r_dim = ra_ref.shape[2]
    P = G - 1                                  # pos + neg edge groups
    h_dim = w1x_ref.shape[1]
    out_dim = w2_ref.shape[1]
    mm = w2_ref.dtype                          # matmul operand dtype (f32 or bf16)

    # Leading-dim merges only (minor dim untouched, TB a multiple of 8) -> free reshapes.
    x = xa_ref[...].reshape(G * TB, x_dim)
    r = ra_ref[...].reshape(G * TB, r_dim)

    b1 = bias_ref[0:1, :h_dim]
    b2 = bias_ref[1:2, :out_dim]
    bs = bias_ref[2:3, :out_dim]
    bd = bias_ref[3:4, :out_dim]
    bo = bo_ref[...]                                                    # (2, 1)

    # decode_fc: Linear -> LeakyReLU(0.01) -> Linear.
    # cat([x, r]) @ W1^T == x @ W1x + r @ W1r (W1 split + pre-transposed in the wrapper).
    h1 = (jnp.dot(x, w1x_ref[...], preferred_element_type=jnp.float32)
          + jnp.dot(r, w1r_ref[...], preferred_element_type=jnp.float32) + b1)
    h1 = jnp.maximum(h1, 0.01 * h1)                                     # LeakyReLU, f32
    h = jnp.dot(h1.astype(mm), w2_ref[...],
                preferred_element_type=jnp.float32) + b2                # (G*TB, out_dim)

    # EdgePredictor: one src_fc matmul, one fused (pos + all neg) dst_fc matmul.
    h_src = h[:TB]
    h_dst = h[TB:]
    e_src = jnp.dot(h_src.astype(mm), wedge_ref[0],
                    preferred_element_type=jnp.float32) + bs            # (TB, out_dim)
    e_dst = jnp.dot(h_dst.astype(mm), wedge_ref[1],
                    preferred_element_type=jnp.float32) + bd            # (P*TB, out_dim)
    e_dst = e_dst.reshape(P, TB, out_dim)                               # leading-dim split
    wo = wedge_ref[2][:2, :]                                            # (2, out_dim)

    # Per edge group: broadcast-add the shared src embedding (no replication copy), project
    # with out_fc directly into the lane-dense (2, TB) layout, sigma transform on row 1 only.
    for p in range(P):                                                  # static unroll, P small
        edges = jnp.maximum(e_src + e_dst[p], 0.0)                      # ReLU, (TB, out_dim)
        pred_t = lax.dot_general(wo, edges.astype(mm),
                                 (((1,), (1,)), ((), ())),
                                 preferred_element_type=jnp.float32) + bo   # (2, TB)
        pred_ref[p, :] = pred_t[0, :].astype(pred_ref.dtype)                        # mean
        pred_ref[P + p, :] = (0.1 + 0.9 * _softplus(pred_t[1, :])).astype(pred_ref.dtype)  # sigma


def deterministic_decoder(x, r, params, *, neg_samples=1, training=False,
                          matmul_dtype=None, block_b=None):
    """
    x: (N, x_dim), r: (N, r_dim) with N = B*(2 + neg_samples); rows grouped as
       [src (B) ; positive-dst (B) ; negative-dst (B*neg_samples)].
    params: PyTorch-layout weights (out, in) and biases (out,).
    Returns (pos_mean, neg_mean) in eval mode, plus (mu, sigma) in training mode.
    """
    N, x_dim = x.shape
    r_dim = r.shape[1]
    G = 2 + neg_samples
    if N % G != 0:
        raise ValueError(f"rows ({N}) must be divisible by 2 + neg_samples ({G})")
    B = N // G
    P = 1 + neg_samples
    h_dim = params["w1"].shape[0]
    out_dim = params["w2"].shape[0]

    mm = jnp.dtype(matmul_dtype) if matmul_dtype is not None else jnp.dtype(jnp.float32)

    # ---- batch tile size: multiple of 8 sublanes, sized from a VMEM byte budget that ----
    # ---- fits every generation (v7x's 64 MiB is the binding constraint).             ----
    per_row = 2 * G * (x_dim + r_dim) * mm.itemsize          # double-buffered x/r tiles
    per_row += 2 * 2 * P * 4                                 # double-buffered output tile (f32)
    per_row += (G * (h_dim + out_dim) + P * out_dim) * 4     # f32 intermediates (h1, h, edges)
    weight_bytes = ((x_dim + r_dim) * h_dim + h_dim * out_dim
                    + 3 * out_dim * out_dim) * mm.itemsize + (4 * max(h_dim, out_dim) + 2) * 4
    budget = 24 << 20
    if block_b is None:
        tb = min(512, _round_up(B, 8))
        while tb > 8 and tb * per_row + weight_bytes > budget:
            tb = max(8, _round_up(tb // 2, 8))
    else:
        tb = max(8, _round_up(block_b, 8))
    TB = min(tb, _round_up(B, 8))
    Bp = _round_up(B, TB)
    num_tiles = Bp // TB

    # ---- one-time wrapper-side glue (constant-foldable XLA ops, no in-kernel relayout) ----
    xa = x.reshape(G, B, x_dim).astype(mm)        # [src; pos; neg_k] grouping == reshape
    ra = r.reshape(G, B, r_dim).astype(mm)
    if Bp != B:
        xa = jnp.pad(xa, ((0, 0), (0, Bp - B), (0, 0)))
        ra = jnp.pad(ra, ((0, 0), (0, Bp - B), (0, 0)))

    w1 = params["w1"]
    w1x_t = w1[:, :x_dim].T.astype(mm)                               # (x_dim, h_dim)
    w1r_t = w1[:, x_dim:].T.astype(mm)                               # (r_dim, h_dim)
    w2_t = params["w2"].T.astype(mm)                                 # (h_dim, out_dim)
    wo_pad = jnp.zeros((out_dim, out_dim), params["wo"].dtype).at[:2, :].set(params["wo"])
    wedge = jnp.stack([params["ws"].T, params["wd"].T, wo_pad]).astype(mm)   # (3, out, out)
    bdim = max(h_dim, out_dim)
    bias4 = jnp.zeros((4, bdim), jnp.float32)
    bias4 = bias4.at[0, :h_dim].set(params["b1"].astype(jnp.float32))
    bias4 = bias4.at[1, :out_dim].set(params["b2"].astype(jnp.float32))
    bias4 = bias4.at[2, :out_dim].set(params["bs"].astype(jnp.float32))
    bias4 = bias4.at[3, :out_dim].set(params["bd"].astype(jnp.float32))
    bo_col = params["bo"].astype(jnp.float32).reshape(2, 1)

    # ---- scheduling hints ----
    flops = (2 * G * B * ((x_dim + r_dim) * h_dim + h_dim * out_dim)
             + 2 * B * out_dim * out_dim + 2 * P * B * out_dim * out_dim
             + 2 * P * B * out_dim * 2)
    bytes_accessed = int(xa.nbytes + ra.nbytes + w1x_t.nbytes + w1r_t.nbytes + w2_t.nbytes
                         + wedge.nbytes + bias4.nbytes + bo_col.nbytes + 2 * P * Bp * 4)
    cost = pl.CostEstimate(flops=int(flops), transcendentals=int(2 * P * B),
                           bytes_accessed=bytes_accessed)

    vmem_est = TB * per_row + weight_bytes
    compiler_params = pltpu.CompilerParams(
        dimension_semantics=("parallel",),                 # shard batch tiles across v7x's 2 TCs
        vmem_limit_bytes=(48 << 20) if vmem_est > (14 << 20) else None,
    )

    pred = pl.pallas_call(
        _decoder_kernel,
        out_shape=jax.ShapeDtypeStruct((2 * P, Bp), jnp.float32),
        grid=(num_tiles,),
        in_specs=[
            pl.BlockSpec((G, TB, x_dim), lambda i: (0, i, 0)),
            pl.BlockSpec((G, TB, r_dim), lambda i: (0, i, 0)),
            pl.BlockSpec((x_dim, h_dim), lambda i: (0, 0)),          # resident weights
            pl.BlockSpec((r_dim, h_dim), lambda i: (0, 0)),
            pl.BlockSpec((h_dim, out_dim), lambda i: (0, 0)),
            pl.BlockSpec((3, out_dim, out_dim), lambda i: (0, 0, 0)),
            pl.BlockSpec((4, bdim), lambda i: (0, 0)),
            pl.BlockSpec((2, 1), lambda i: (0, 0)),
        ],
        out_specs=pl.BlockSpec((2 * P, TB), lambda i: (0, i)),
        compiler_params=compiler_params,
        cost_estimate=cost,
    )(xa, ra, w1x_t, w1r_t, w2_t, wedge, bias4, bo_col)

    pred = pred[:, :B]                 # drop padded batch columns
    means = pred[:P]                   # (P, B): row 0 = pos, rows 1.. = neg replicas
    sigmas = pred[P:]                  # (P, B)
    pos_mean = means[0].reshape(B, 1)
    neg_mean = means[1:].reshape(neg_samples * B, 1)
    if training:
        mu = means.reshape(P * B, 1)
        sigma = sigmas.reshape(P * B, 1)
        # TODO(synk): torch.distributions.Normal has no Pallas equivalent; the (mu, sigma)
        # parameters of the Normal are returned instead of a distribution object.
        return pos_mean, neg_mean, (mu, sigma)
    return pos_mean, neg_mean


# ----------------------------- test scaffolding -----------------------------

def _init_linear(key, out_dim, in_dim, dtype=jnp.float32):
    """Deterministic init mimicking torch.nn.Linear's U(-1/sqrt(in), 1/sqrt(in))."""
    kw, kb = jax.random.split(key)
    bound = 1.0 / jnp.sqrt(jnp.float32(in_dim))
    w = jax.random.uniform(kw, (out_dim, in_dim), dtype, -bound, bound)
    b = jax.random.uniform(kb, (out_dim,), dtype, -bound, bound)
    return w, b


def _reference(x, r, p, neg_samples):
    """Pure-JAX reference matching the PyTorch module."""
    B = x.shape[0] // (2 + neg_samples)
    xr = jnp.concatenate([x, r], axis=-1)
    h1 = xr @ p["w1"].T + p["b1"]
    h1 = jnp.where(h1 > 0, h1, 0.01 * h1)                  # LeakyReLU
    h = h1 @ p["w2"].T + p["b2"]
    h_src = h[:B] @ p["ws"].T + p["bs"]
    h_pos = h[B:2 * B] @ p["wd"].T + p["bd"]
    h_neg = h[2 * B:] @ p["wd"].T + p["bd"]
    e_pos = jax.nn.relu(h_src + h_pos)
    e_neg = jax.nn.relu(jnp.tile(h_src, (neg_samples, 1)) + h_neg)
    pos_pred = e_pos @ p["wo"].T + p["bo"]
    neg_pred = e_neg @ p["wo"].T + p["bo"]
    pos_mean, pos_var = pos_pred[:, :1], pos_pred[:, 1:]
    neg_mean, neg_var = neg_pred[:, :1], neg_pred[:, 1:]
    mu = jnp.concatenate([pos_mean, neg_mean], axis=0)
    sigma = 0.1 + 0.9 * jax.nn.softplus(jnp.concatenate([pos_var, neg_var], axis=0))
    return pos_mean, neg_mean, mu, sigma


def _make_case(key, batch, neg_samples, x_dim, r_dim, h_dim, out_dim):
    N = batch * (2 + neg_samples)
    kx, kr, k1, k2, k3, k4, k5 = jax.random.split(key, 7)
    x = jax.random.normal(kx, (N, x_dim), jnp.float32)
    r = jax.random.normal(kr, (N, r_dim), jnp.float32)
    w1, b1 = _init_linear(k1, h_dim, x_dim + r_dim)   # decode_fc Linear1
    w2, b2 = _init_linear(k2, out_dim, h_dim)         # decode_fc Linear2
    ws, bs = _init_linear(k3, out_dim, out_dim)       # edge_predictor.src_fc
    wd, bd = _init_linear(k4, out_dim, out_dim)       # edge_predictor.dst_fc
    wo, bo = _init_linear(k5, 2, out_dim)             # edge_predictor.out_fc
    params = dict(w1=w1, b1=b1, w2=w2, b2=b2, ws=ws, bs=bs, wd=wd, bd=bd, wo=wo, bo=bo)
    return x, r, params


if __name__ == "__main__":
    key = jax.random.PRNGKey(0)
    k_a, k_b = jax.random.split(key)

    # Case 1: single-tile grid, f32 matmuls, strict check.
    batch, neg = 8, 1
    x, r, params = _make_case(k_a, batch, neg, x_dim=16, r_dim=32, h_dim=64, out_dim=32)
    pos_mean, neg_mean, (mu, sigma) = deterministic_decoder(
        x, r, params, neg_samples=neg, training=True)
    jax.block_until_ready((pos_mean, neg_mean, mu, sigma))
    pm_ref, nm_ref, mu_ref, sig_ref = _reference(x, r, params, neg)
    assert pos_mean.shape == (batch, 1) and neg_mean.shape == (batch * neg, 1)
    assert mu.shape == (batch * (1 + neg), 1) and sigma.shape == mu.shape
    assert jnp.allclose(pos_mean, pm_ref, atol=1e-5, rtol=1e-5)
    assert jnp.allclose(neg_mean, nm_ref, atol=1e-5, rtol=1e-5)
    assert jnp.allclose(mu, mu_ref, atol=1e-5, rtol=1e-5)
    assert jnp.allclose(sigma, sig_ref, atol=1e-5, rtol=1e-5)
    assert bool(jnp.all(sigma >= 0.1))

    # Case 2: multi-tile "parallel" grid (block_b=8 -> 3 tiles), neg_samples=2, eval mode.
    batch2, neg2 = 24, 2
    x2, r2, params2 = _make_case(k_b, batch2, neg2, x_dim=16, r_dim=32, h_dim=64, out_dim=32)
    pm2, nm2 = deterministic_decoder(x2, r2, params2, neg_samples=neg2, block_b=8)
    jax.block_until_ready((pm2, nm2))
    pm2_ref, nm2_ref, _, _ = _reference(x2, r2, params2, neg2)
    assert pm2.shape == (batch2, 1) and nm2.shape == (batch2 * neg2, 1)
    assert jnp.allclose(pm2, pm2_ref, atol=1e-5, rtol=1e-5)
    assert jnp.allclose(nm2, nm2_ref, atol=1e-5, rtol=1e-5)

    # Case 3: bf16 matmul operands (f32 accumulation / f32 epilogue) — loose tolerance.
    pm3, nm3, (mu3, sig3) = deterministic_decoder(
        x, r, params, neg_samples=neg, training=True, matmul_dtype=jnp.bfloat16)
    jax.block_until_ready((pm3, nm3, mu3, sig3))
    assert jnp.allclose(mu3, mu_ref, atol=0.15, rtol=0.1)
    assert jnp.allclose(sig3, sig_ref, atol=0.15, rtol=0.1)
    assert bool(jnp.all(sig3 >= 0.1 - 1e-3))

    print("KERNEL_OK")
</pallas_src>

<mosaic_0001>
module attributes {stable_mosaic.version = 11 : i64} {
  func.func @_decoder_kernel(%arg0: i32, %arg1: memref<3x8x16xf32, #tpu.memory_space<vmem>>, %arg2: memref<3x8x32xf32, #tpu.memory_space<vmem>>, %arg3: memref<16x64xf32, #tpu.memory_space<vmem>>, %arg4: memref<32x64xf32, #tpu.memory_space<vmem>>, %arg5: memref<64x32xf32, #tpu.memory_space<vmem>>, %arg6: memref<3x32x32xf32, #tpu.memory_space<vmem>>, %arg7: memref<4x64xf32, #tpu.memory_space<vmem>>, %arg8: memref<2x1xf32, #tpu.memory_space<vmem>>, %arg9: memref<4x8xf32, #tpu.memory_space<vmem>>) attributes {dimension_semantics = [#tpu.dimension_semantics<parallel>], iteration_bounds = array<i64: 1>, scalar_prefetch = 0 : i64, scratch_operands = 0 : i64, tpu.core_type = #tpu.core_type<tc>, window_params = [{transform_indices = @transform_0, window_bounds = array<i64: 3, 8, 16>}, {transform_indices = @transform_1, window_bounds = array<i64: 3, 8, 32>}, {pipeline_mode = #tpu.pipeline_mode<synchronous>, transform_indices = @transform_2, window_bounds = array<i64: 16, 64>}, {pipeline_mode = #tpu.pipeline_mode<synchronous>, transform_indices = @transform_3, window_bounds = array<i64: 32, 64>}, {pipeline_mode = #tpu.pipeline_mode<synchronous>, transform_indices = @transform_4, window_bounds = array<i64: 64, 32>}, {pipeline_mode = #tpu.pipeline_mode<synchronous>, transform_indices = @transform_5, window_bounds = array<i64: 3, 32, 32>}, {pipeline_mode = #tpu.pipeline_mode<synchronous>, transform_indices = @transform_6, window_bounds = array<i64: 4, 64>}, {pipeline_mode = #tpu.pipeline_mode<synchronous>, transform_indices = @transform_7, window_bounds = array<i64: 2, 1>}, {transform_indices = @transform_8, window_bounds = array<i64: 4, 8>}]} {
    %c0 = arith.constant 0 : index
    %c0_0 = arith.constant 0 : index
    %c0_1 = arith.constant 0 : index
    %0 = vector.load %arg1[%c0, %c0_0, %c0_1] : memref<3x8x16xf32, #tpu.memory_space<vmem>>, vector<3x8x16xf32>
    %1 = vector.shape_cast %0 : vector<3x8x16xf32> to vector<24x16xf32>
    %c0_2 = arith.constant 0 : index
    %c0_3 = arith.constant 0 : index
    %c0_4 = arith.constant 0 : index
    %2 = vector.load %arg2[%c0_2, %c0_3, %c0_4] : memref<3x8x32xf32, #tpu.memory_space<vmem>>, vector<3x8x32xf32>
    %3 = vector.shape_cast %2 : vector<3x8x32xf32> to vector<24x32xf32>
    %c0_5 = arith.constant 0 : index
    %c0_6 = arith.constant 0 : index
    %4 = vector.load %arg7[%c0_5, %c0_6] : memref<4x64xf32, #tpu.memory_space<vmem>>, vector<1x64xf32>
    %c1 = arith.constant 1 : index
    %c0_7 = arith.constant 0 : index
    %5 = vector.load %arg7[%c1, %c0_7] : memref<4x64xf32, #tpu.memory_space<vmem>>, vector<1x32xf32>
    %c2 = arith.constant 2 : index
    %c0_8 = arith.constant 0 : index
    %6 = vector.load %arg7[%c2, %c0_8] : memref<4x64xf32, #tpu.memory_space<vmem>>, vector<1x32xf32>
    %c3 = arith.constant 3 : index
    %c0_9 = arith.constant 0 : index
    %7 = vector.load %arg7[%c3, %c0_9] : memref<4x64xf32, #tpu.memory_space<vmem>>, vector<1x32xf32>
    %c0_10 = arith.constant 0 : index
    %c0_11 = arith.constant 0 : index
    %8 = vector.load %arg8[%c0_10, %c0_11] : memref<2x1xf32, #tpu.memory_space<vmem>>, vector<2x1xf32>
    %c0_12 = arith.constant 0 : index
    %c0_13 = arith.constant 0 : index
    %9 = vector.load %arg3[%c0_12, %c0_13] : memref<16x64xf32, #tpu.memory_space<vmem>>, vector<16x64xf32>
    %cst = arith.constant dense<0.000000e+00> : vector<24x64xf32>
    %10 = tpu.matmul %1, %9, %cst {dimension_numbers = #tpu.dot_dimension_numbers<[1], [0], [0], [1], [0, 0, 1, 1], [], []>} : vector<24x16xf32>, vector<16x64xf32>, vector<24x64xf32> -> vector<24x64xf32>
    %c0_14 = arith.constant 0 : index
    %c0_15 = arith.constant 0 : index
    %11 = vector.load %arg4[%c0_14, %c0_15] : memref<32x64xf32, #tpu.memory_space<vmem>>, vector<32x64xf32>
    %cst_16 = arith.constant dense<0.000000e+00> : vector<24x64xf32>
    %12 = tpu.matmul %3, %11, %cst_16 {dimension_numbers = #tpu.dot_dimension_numbers<[1], [0], [0], [1], [0, 0, 1, 1], [], []>} : vector<24x32xf32>, vector<32x64xf32>, vector<24x64xf32> -> vector<24x64xf32>
    %13 = arith.addf %10, %12 : vector<24x64xf32>
    %14 = vector.broadcast %4 : vector<1x64xf32> to vector<24x64xf32>
    %15 = arith.addf %13, %14 : vector<24x64xf32>
    %cst_17 = arith.constant 0.00999999977 : f32
    %16 = vector.broadcast %cst_17 : f32 to vector<24x64xf32>
    %17 = arith.mulf %16, %15 : vector<24x64xf32>
    %18 = arith.maximumf %15, %17 : vector<24x64xf32>
    %c0_18 = arith.constant 0 : index
    %c0_19 = arith.constant 0 : index
    %19 = vector.load %arg5[%c0_18, %c0_19] : memref<64x32xf32, #tpu.memory_space<vmem>>, vector<64x32xf32>
    %cst_20 = arith.constant dense<0.000000e+00> : vector<24x32xf32>
    %20 = tpu.matmul %18, %19, %cst_20 {dimension_numbers = #tpu.dot_dimension_numbers<[1], [0], [0], [1], [0, 0, 1, 1], [], []>} : vector<24x64xf32>, vector<64x32xf32>, vector<24x32xf32> -> vector<24x32xf32>
    %21 = vector.broadcast %5 : vector<1x32xf32> to vector<24x32xf32>
    %22 = arith.addf %20, %21 : vector<24x32xf32>
    %23 = vector.extract_strided_slice %22 {offsets = [0, 0], sizes = [8, 32], strides = [1, 1]} : vector<24x32xf32> to vector<8x32xf32>
    %24 = vector.extract_strided_slice %22 {offsets = [8, 0], sizes = [16, 32], strides = [1, 1]} : vector<24x32xf32> to vector<16x32xf32>
    %c0_21 = arith.constant 0 : index
    %c0_22 = arith.constant 0 : index
    %c0_23 = arith.constant 0 : index
    %25 = vector.load %arg6[%c0_21, %c0_22, %c0_23] : memref<3x32x32xf32, #tpu.memory_space<vmem>>, vector<1x32x32xf32>
    %26 = vector.shape_cast %25 : vector<1x32x32xf32> to vector<32x32xf32>
    %cst_24 = arith.constant dense<0.000000e+00> : vector<8x32xf32>
    %27 = tpu.matmul %23, %26, %cst_24 {dimension_numbers = #tpu.dot_dimension_numbers<[1], [0], [0], [1], [0, 0, 1, 1], [], []>} : vector<8x32xf32>, vector<32x32xf32>, vector<8x32xf32> -> vector<8x32xf32>
    %28 = vector.broadcast %6 : vector<1x32xf32> to vector<8x32xf32>
    %29 = arith.addf %27, %28 : vector<8x32xf32>
    %c1_25 = arith.constant 1 : index
    %c0_26 = arith.constant 0 : index
    %c0_27 = arith.constant 0 : index
    %30 = vector.load %arg6[%c1_25, %c0_26, %c0_27] : memref<3x32x32xf32, #tpu.memory_space<vmem>>, vector<1x32x32xf32>
    %31 = vector.shape_cast %30 : vector<1x32x32xf32> to vector<32x32xf32>
    %cst_28 = arith.constant dense<0.000000e+00> : vector<16x32xf32>
    %32 = tpu.matmul %24, %31, %cst_28 {dimension_numbers = #tpu.dot_dimension_numbers<[1], [0], [0], [1], [0, 0, 1, 1], [], []>} : vector<16x32xf32>, vector<32x32xf32>, vector<16x32xf32> -> vector<16x32xf32>
    %33 = vector.broadcast %7 : vector<1x32xf32> to vector<16x32xf32>
    %34 = arith.addf %32, %33 : vector<16x32xf32>
    %35 = vector.shape_cast %34 : vector<16x32xf32> to vector<2x8x32xf32>
    %c2_29 = arith.constant 2 : index
    %c0_30 = arith.constant 0 : index
    %c0_31 = arith.constant 0 : index
    %36 = vector.load %arg6[%c2_29, %c0_30, %c0_31] : memref<3x32x32xf32, #tpu.memory_space<vmem>>, vector<1x32x32xf32>
    %37 = vector.shape_cast %36 : vector<1x32x32xf32> to vector<32x32xf32>
    %38 = vector.extract_strided_slice %37 {offsets = [0, 0], sizes = [2, 32], strides = [1, 1]} : vector<32x32xf32> to vector<2x32xf32>
    %39 = vector.extract_strided_slice %35 {offsets = [0, 0, 0], sizes = [1, 8, 32], strides = [1, 1, 1]} : vector<2x8x32xf32> to vector<1x8x32xf32>
    %40 = vector.shape_cast %39 : vector<1x8x32xf32> to vector<8x32xf32>
    %41 = arith.addf %29, %40 : vector<8x32xf32>
    %cst_32 = arith.constant 0.000000e+00 : f32
    %42 = vector.broadcast %cst_32 : f32 to vector<8x32xf32>
    %43 = arith.maximumf %41, %42 : vector<8x32xf32>
    %cst_33 = arith.constant dense<0.000000e+00> : vector<2x8xf32>
    %44 = tpu.matmul %38, %43, %cst_33 {dimension_numbers = #tpu.dot_dimension_numbers<[1], [1], [0], [0], [0, 0, 1, 0], [], []>} : vector<2x32xf32>, vector<8x32xf32>, vector<2x8xf32> -> vector<2x8xf32>
    %45 = vector.broadcast %8 : vector<2x1xf32> to vector<2x8xf32>
    %46 = arith.addf %44, %45 : vector<2x8xf32>
    %47 = vector.extract_strided_slice %46 {offsets = [0, 0], sizes = [1, 8], strides = [1, 1]} : vector<2x8xf32> to vector<1x8xf32>
    %48 = vector.shape_cast %47 : vector<1x8xf32> to vector<8xf32>
    %c0_34 = arith.constant 0 : index
    %c0_35 = arith.constant 0 : index
    %49 = vector.load %arg9[%c0_34, %c0_35] : memref<4x8xf32, #tpu.memory_space<vmem>>, vector<1x8xf32>
    %50 = vector.shape_cast %49 : vector<1x8xf32> to vector<8xf32>
    %51 = vector.shape_cast %48 : vector<8xf32> to vector<1x8xf32>
    tpu.vector_store %arg9[%c0_34, %c0_35], %51 {strides = array<i32>} : memref<4x8xf32, #tpu.memory_space<vmem>>, vector<1x8xf32>,
    %52 = vector.extract_strided_slice %46 {offsets = [1, 0], sizes = [1, 8], strides = [1, 1]} : vector<2x8xf32> to vector<1x8xf32>
    %53 = vector.shape_cast %52 : vector<1x8xf32> to vector<8xf32>
    %cst_36 = arith.constant 0.000000e+00 : f32
    %54 = vector.broadcast %cst_36 : f32 to vector<8xf32>
    %55 = arith.maximumf %53, %54 : vector<8xf32>
    %56 = math.absf %53 : vector<8xf32>
    %cst_37 = arith.constant 0.000000e+00 : f32
    %57 = vector.broadcast %cst_37 : f32 to vector<8xf32>
    %58 = arith.subf %57, %56 : vector<8xf32>
    %59 = math.exp %58 : vector<8xf32>
    %cst_38 = arith.constant 1.000000e+00 : f32
    %60 = vector.broadcast %cst_38 : f32 to vector<8xf32>
    %61 = arith.addf %60, %59 : vector<8xf32>
    %62 = math.log %61 : vector<8xf32>
    %63 = arith.addf %55, %62 : vector<8xf32>
    %cst_39 = arith.constant 0.899999976 : f32
    %64 = vector.broadcast %cst_39 : f32 to vector<8xf32>
    %65 = arith.mulf %64, %63 : vector<8xf32>
    %cst_40 = arith.constant 1.000000e-01 : f32
    %66 = vector.broadcast %cst_40 : f32 to vector<8xf32>
    %67 = arith.addf %66, %65 : vector<8xf32>
    %c2_41 = arith.constant 2 : index
    %c0_42 = arith.constant 0 : index
    %68 = vector.load %arg9[%c2_41, %c0_42] : memref<4x8xf32, #tpu.memory_space<vmem>>, vector<1x8xf32>
    %69 = vector.shape_cast %68 : vector<1x8xf32> to vector<8xf32>
    %70 = vector.shape_cast %67 : vector<8xf32> to vector<1x8xf32>
    tpu.vector_store %arg9[%c2_41, %c0_42], %70 {strides = array<i32>} : memref<4x8xf32, #tpu.memory_space<vmem>>, vector<1x8xf32>,
    %71 = vector.extract_strided_slice %35 {offsets = [1, 0, 0], sizes = [1, 8, 32], strides = [1, 1, 1]} : vector<2x8x32xf32> to vector<1x8x32xf32>
    %72 = vector.shape_cast %71 : vector<1x8x32xf32> to vector<8x32xf32>
    %73 = arith.addf %29, %72 : vector<8x32xf32>
    %cst_43 = arith.constant 0.000000e+00 : f32
    %74 = vector.broadcast %cst_43 : f32 to vector<8x32xf32>
    %75 = arith.maximumf %73, %74 : vector<8x32xf32>
    %cst_44 = arith.constant dense<0.000000e+00> : vector<2x8xf32>
    %76 = tpu.matmul %38, %75, %cst_44 {dimension_numbers = #tpu.dot_dimension_numbers<[1], [1], [0], [0], [0, 0, 1, 0], [], []>} : vector<2x32xf32>, vector<8x32xf32>, vector<2x8xf32> -> vector<2x8xf32>
    %77 = vector.broadcast %8 : vector<2x1xf32> to vector<2x8xf32>
    %78 = arith.addf %76, %77 : vector<2x8xf32>
    %79 = vector.extract_strided_slice %78 {offsets = [0, 0], sizes = [1, 8], strides = [1, 1]} : vector<2x8xf32> to vector<1x8xf32>
    %80 = vector.shape_cast %79 : vector<1x8xf32> to vector<8xf32>
    %c1_45 = arith.constant 1 : index
    %c0_46 = arith.constant 0 : index
    %81 = vector.load %arg9[%c1_45, %c0_46] : memref<4x8xf32, #tpu.memory_space<vmem>>, vector<1x8xf32>
    %82 = vector.shape_cast %81 : vector<1x8xf32> to vector<8xf32>
    %83 = vector.shape_cast %80 : vector<8xf32> to vector<1x8xf32>
    tpu.vector_store %arg9[%c1_45, %c0_46], %83 {strides = array<i32>} : memref<4x8xf32, #tpu.memory_space<vmem>>, vector<1x8xf32>,
    %84 = vector.extract_strided_slice %78 {offsets = [1, 0], sizes = [1, 8], strides = [1, 1]} : vector<2x8xf32> to vector<1x8xf32>
    %85 = vector.shape_cast %84 : vector<1x8xf32> to vector<8xf32>
    %cst_47 = arith.constant 0.000000e+00 : f32
    %86 = vector.broadcast %cst_47 : f32 to vector<8xf32>
    %87 = arith.maximumf %85, %86 : vector<8xf32>
    %88 = math.absf %85 : vector<8xf32>
    %cst_48 = arith.constant 0.000000e+00 : f32
    %89 = vector.broadcast %cst_48 : f32 to vector<8xf32>
    %90 = arith.subf %89, %88 : vector<8xf32>
    %91 = math.exp %90 : vector<8xf32>
    %cst_49 = arith.constant 1.000000e+00 : f32
    %92 = vector.broadcast %cst_49 : f32 to vector<8xf32>
    %93 = arith.addf %92, %91 : vector<8xf32>
    %94 = math.log %93 : vector<8xf32>
    %95 = arith.addf %87, %94 : vector<8xf32>
    %cst_50 = arith.constant 0.899999976 : f32
    %96 = vector.broadcast %cst_50 : f32 to vector<8xf32>
    %97 = arith.mulf %96, %95 : vector<8xf32>
    %cst_51 = arith.constant 1.000000e-01 : f32
    %98 = vector.broadcast %cst_51 : f32 to vector<8xf32>
    %99 = arith.addf %98, %97 : vector<8xf32>
    %c3_52 = arith.constant 3 : index
    %c0_53 = arith.constant 0 : index
    %100 = vector.load %arg9[%c3_52, %c0_53] : memref<4x8xf32, #tpu.memory_space<vmem>>, vector<1x8xf32>
    %101 = vector.shape_cast %100 : vector<1x8xf32> to vector<8xf32>
    %102 = vector.shape_cast %99 : vector<8xf32> to vector<1x8xf32>
    tpu.vector_store %arg9[%c3_52, %c0_53], %102 {strides = array<i32>} : memref<4x8xf32, #tpu.memory_space<vmem>>, vector<1x8xf32>,
    return
  }
  func.func @transform_0(%arg0: i32) -> (i32, i32, i32) {
    %c0_i32 = arith.constant 0 : i32
    %c0_i32_0 = arith.constant 0 : i32
    %c0_i32_1 = arith.constant 0 : i32
    return %c0_i32, %arg0, %c0_i32_0 : i32, i32, i32
  }
  func.func @transform_1(%arg0: i32) -> (i32, i32, i32) {
    %c0_i32 = arith.constant 0 : i32
    %c0_i32_0 = arith.constant 0 : i32
    %c0_i32_1 = arith.constant 0 : i32
    return %c0_i32, %arg0, %c0_i32_0 : i32, i32, i32
  }
  func.func @transform_2(%arg0: i32) -> (i32, i32) {
    %c0_i32 = arith.constant 0 : i32
    %c0_i32_0 = arith.constant 0 : i32
    %c0_i32_1 = arith.constant 0 : i32
    return %c0_i32, %c0_i32_0 : i32, i32
  }
  func.func @transform_3(%arg0: i32) -> (i32, i32) {
    %c0_i32 = arith.constant 0 : i32
    %c0_i32_0 = arith.constant 0 : i32
    %c0_i32_1 = arith.constant 0 : i32
    return %c0_i32, %c0_i32_0 : i32, i32
  }
  func.func @transform_4(%arg0: i32) -> (i32, i32) {
    %c0_i32 = arith.constant 0 : i32
    %c0_i32_0 = arith.constant 0 : i32
    %c0_i32_1 = arith.constant 0 : i32
    return %c0_i32, %c0_i32_0 : i32, i32
  }
  func.func @transform_5(%arg0: i32) -> (i32, i32, i32) {
    %c0_i32 = arith.constant 0 : i32
    %c0_i32_0 = arith.constant 0 : i32
    %c0_i32_1 = arith.constant 0 : i32
    %c0_i32_2 = arith.constant 0 : i32
    return %c0_i32, %c0_i32_0, %c0_i32_1 : i32, i32, i32
  }
  func.func @transform_6(%arg0: i32) -> (i32, i32) {
    %c0_i32 = arith.constant 0 : i32
    %c0_i32_0 = arith.constant 0 : i32
    %c0_i32_1 = arith.constant 0 : i32
    return %c0_i32, %c0_i32_0 : i32, i32
  }
  func.func @transform_7(%arg0: i32) -> (i32, i32) {
    %c0_i32 = arith.constant 0 : i32
    %c0_i32_0 = arith.constant 0 : i32
    %c0_i32_1 = arith.constant 0 : i32
    return %c0_i32, %c0_i32_0 : i32, i32
  }
  func.func @transform_8(%arg0: i32) -> (i32, i32) {
    %c0_i32 = arith.constant 0 : i32
    %c0_i32_0 = arith.constant 0 : i32
    return %c0_i32, %arg0 : i32, i32
  }
}

</mosaic_0001>

<llo_original>
// kernel: tpu_custom_call.1
$region0: #{tpu_custom_call.1}
  #allocation0 [shape = 'u32[]', space=smem, size = 0x4, offset = 0x4, fixed_abs, tag = 'smem constant byte address 0x4 - core index']
  #allocation1 [shape = 'u32[144,128]{1,0:T(1,128)}', space=vmem, size = 0x12000, scoped, tag = 'internal scratch']
  %s0 = inlined_call_operand.hbm [shape: f32[3,8,16], index: 0, kind: input, shape index: {}]
  %s1 = inlined_call_operand.hbm [shape: f32[3,8,32], index: 1, kind: input, shape index: {}]
  %s2 = inlined_call_operand.vmem [shape: f32[16,64], index: 2, kind: input, shape index: {}]
  %s3 = inlined_call_operand.hbm [shape: f32[32,64], index: 3, kind: input, shape index: {}]
  %s4 = inlined_call_operand.vmem [shape: f32[64,32], index: 4, kind: input, shape index: {}]
  %s5 = inlined_call_operand.vmem [shape: f32[3,32,32], index: 5, kind: input, shape index: {}]
  %s6 = inlined_call_operand.vmem [shape: f32[4,64], index: 6, kind: input, shape index: {}]
  %s7 = inlined_call_operand.vmem [shape: f32[2,1], index: 7, kind: input, shape index: {}]
  %s8 = inlined_call_operand.hbm [shape: f32[4,8], index: 8, kind: output, shape index: {}]
  %s9 = sld [smem:[#allocation0]]
  $region54: #{tpu_custom_call.1} parent=0
    _
  %s11 = ssub.s32 1, %s9
  %s12 = scalar_select 0, %s11, %s9
  $region1: #{tpu_custom_call.1} parent=0
    #allocation2 [shape = 'u8[12288]{0}', space=vmem, size = 0x3000, scoped, tag = 'input window, operand 0, single buffered']
    #allocation3 [shape = 's32[1]{0}', space=sflag, size = 0x4, scoped, tag = 'scoped memory for tpu_custom_call.1']
    #allocation4 [shape = 's32[1]{0}', space=sflag, size = 0x4, scoped, tag = 'scoped memory for tpu_custom_call.1']
    #allocation5 [shape = 'u8[12288]{0}', space=vmem, size = 0x3000, scoped, tag = 'input window, operand 1, single buffered']
    #allocation6 [shape = 's32[1]{0}', space=sflag, size = 0x4, scoped, tag = 'scoped memory for tpu_custom_call.1']
    #allocation7 [shape = 'u8[16384]{0}', space=vmem, size = 0x4000, scoped, tag = 'input window, operand 3, single buffered']
    #allocation8 [shape = 'u8[2048]{0}', space=vmem, size = 0x800, scoped, tag = 'output window, operand 0, single buffered']
    %13 = vsyncpa [#allocation3], 0
    %14 = vsyncpa [#allocation6], 0
    %15 = vsyncpa [#allocation4], 0
    // Predicated region
    $region2: #{tpu_custom_call.1} parent=1 // pred_check
      _
    $region3: #{tpu_custom_call.1} parent=1 // pred_check_branch
      %17 = sbr.rel (0) target = $region5
    $region4: #{tpu_custom_call.1} parent=1 // pred_region
      %s19 = ssub.s32 384, 384
      %20 = vsyncadd [#allocation3], %s19
      %s21 = sshll.u32 [#allocation2], 4
      %s22 = int_to_ptr.vmem [resolvable:$true] %s21
      %27 = dma.hbm_to_vmem [thread:$0]  %s0, 384, %s22, [#allocation3], 128, 128, 8
    $region5: #{tpu_custom_call.1} parent=1 // pred_fallthru
      _
    // Predicated region
    $region6: #{tpu_custom_call.1} parent=1 // pred_check
      _
    $region7: #{tpu_custom_call.1} parent=1 // pred_check_branch
      %29 = sbr.rel (0) target = $region9
    $region8: #{tpu_custom_call.1} parent=1 // pred_region
      %s31 = ssub.s32 384, 384
      %32 = vsyncadd [#allocation6], %s31
      %s33 = sshll.u32 [#allocation5], 4
      %s34 = int_to_ptr.vmem [resolvable:$true] %s33
      %39 = dma.hbm_to_vmem [thread:$0]  %s1, 384, %s34, [#allocation6], 128, 128, 8
    $region9: #{tpu_custom_call.1} parent=1 // pred_fallthru
      _
    // Predicated region
    $region10: #{tpu_custom_call.1} parent=1 // pred_check
      _
    $region11: #{tpu_custom_call.1} parent=1 // pred_check_branch
      %41 = sbr.rel (0) target = $region13
    $region12: #{tpu_custom_call.1} parent=1 // pred_region
      _
    $region13: #{tpu_custom_call.1} parent=1 // pred_fallthru
      _
    // Predicated region
    $region14: #{tpu_custom_call.1} parent=1 // pred_check
      _
    $region15: #{tpu_custom_call.1} parent=1 // pred_check_branch
      %43 = sbr.rel (0) target = $region17
    $region16: #{tpu_custom_call.1} parent=1 // pred_region
      %s45 = ssub.s32 512, 512
      %46 = vsyncadd [#allocation6], %s45
      %s47 = sshll.u32 [#allocation7], 4
      %s48 = int_to_ptr.vmem [resolvable:$true] %s47
      %53 = dma.hbm_to_vmem [thread:$0]  %s3, 512, %s48, [#allocation6], 128, 128, 8
    $region17: #{tpu_custom_call.1} parent=1 // pred_fallthru
      _
    // Predicated region
    $region18: #{tpu_custom_call.1} parent=1 // pred_check
      _
    $region19: #{tpu_custom_call.1} parent=1 // pred_check_branch
      %55 = sbr.rel (0) target = $region21
    $region20: #{tpu_custom_call.1} parent=1 // pred_region
      _
    $region21: #{tpu_custom_call.1} parent=1 // pred_fallthru
      _
    // Predicated region
    $region22: #{tpu_custom_call.1} parent=1 // pred_check
      _
    $region23: #{tpu_custom_call.1} parent=1 // pred_check_branch
      %57 = sbr.rel (0) target = $region25
    $region24: #{tpu_custom_call.1} parent=1 // pred_region
      _
    $region25: #{tpu_custom_call.1} parent=1 // pred_fallthru
      _
    // Predicated region
    $region26: #{tpu_custom_call.1} parent=1 // pred_check
      _
    $region27: #{tpu_custom_call.1} parent=1 // pred_check_branch
      %59 = sbr.rel (0) target = $region29
    $region28: #{tpu_custom_call.1} parent=1 // pred_region
      _
    $region29: #{tpu_custom_call.1} parent=1 // pred_fallthru
      _
    // Predicated region
    $region30: #{tpu_custom_call.1} parent=1 // pred_check
      _
    $region31: #{tpu_custom_call.1} parent=1 // pred_check_branch
      %61 = sbr.rel (0) target = $region33
    $region32: #{tpu_custom_call.1} parent=1 // pred_region
      _
    $region33: #{tpu_custom_call.1} parent=1 // pred_fallthru
      _
    // Predicated region
    $region34: #{tpu_custom_call.1} parent=1 // pred_check
      _
    $region35: #{tpu_custom_call.1} parent=1 // pred_check_branch
      %63 = sbr.rel (0) target = $region37
    $region36: #{tpu_custom_call.1} parent=1 // pred_region
      %64 = dma.done [#allocation3], 384
    $region37: #{tpu_custom_call.1} parent=1 // pred_fallthru
      _
    // Predicated region
    $region38: #{tpu_custom_call.1} parent=1 // pred_check
      _
    $region39: #{tpu_custom_call.1} parent=1 // pred_check_branch
      %66 = sbr.rel (0) target = $region41
    $region40: #{tpu_custom_call.1} parent=1 // pred_region
      %67 = dma.done [#allocation6], 384
    $region41: #{tpu_custom_call.1} parent=1 // pred_fallthru
      _
    // Predicated region
    $region42: #{tpu_custom_call.1} parent=1 // pred_check
      _
    $region43: #{tpu_custom_call.1} parent=1 // pred_check_branch
      %69 = sbr.rel (0) target = $region45
    $region44: #{tpu_custom_call.1} parent=1 // pred_region
      %70 = dma.done [#allocation6], 512
    $region45: #{tpu_custom_call.1} parent=1 // pred_fallthru
      _
    %v71 = vld [vmem:[#allocation2] sm:$0xff]
    %v72 = vld [vmem:[#allocation2 + $0x8] sm:$0xff]
    %v73 = vld [vmem:[#allocation2 + $0x10] sm:$0xff]
    %v74 = vld [vmem:[#allocation5] sm:$0xff]
    %v75 = vld [vmem:[#allocation5 + $0x8] sm:$0xff]
    %v76 = vld [vmem:[#allocation5 + $0x10] sm:$0xff]
    %v77 = vld [vmem:[%s6] sm:$0x1]
    %v78 = vld [vmem:[%s6 + $0x1] sm:$0x1]
    %v79 = vld [vmem:[%s6 + $0x2] sm:$0x1]
    %v80 = vld [vmem:[%s6 + $0x3] sm:$0x1]
    %v81 = vld [vmem:[%s7] sm:$0x3]
    %v82 = vld [vmem:[%s2] sm:$0xff]
    %v83 = vld [vmem:[%s2 + $0x8] sm:$0xff]
    %v84 = vld [vmem:[#allocation7] sm:$0xff]
    %v85 = vld [vmem:[#allocation7 + $0x8] sm:$0xff]
    %v86 = vld [vmem:[#allocation7 + $0x10] sm:$0xff]
    %v87 = vld [vmem:[#allocation7 + $0x18] sm:$0xff]
    %vm88 = vcmask 261120
    %v90 = vsel %vm88, %v74, 0
    %v93 = vsel %vm88, %v75, 0
    %v96 = vsel %vm88, %v76, 0
    %98 = vmatprep.subr.mxu0 0.0
    %99 = vmatpush1.msra.mxu0 %v84
    %100 = vmatprep.subr.mxu0 0.0
    %101 = vmatpush1.msra.mxu0 %v85
    %102 = vmatprep.subr.mxu0 0.0
    %103 = vmatpush1.msra.mxu0 %v86
    %104 = vmatprep.subr.mxu0 0.0
    %105 = vmatpush1.msra.mxu0 %v87
    %106 = vmatprep.subr.mxu0 0.0
    %107 = vmatpush1.msra.mxu0 0.0
    %108 = vmatprep.subr.mxu0 0.0
    %109 = vmatpush1.msra.mxu0 0.0
    %110 = vmatprep.subr.mxu0 0.0
    %111 = vmatpush1.msra.mxu0 0.0
    %112 = vmatprep.subr.mxu0 0.0
    %113 = vmatpush1.msra.mxu0 0.0
    %114 = vmatprep.subr.mxu0 0.0
    %115 = vmatpush1.msra.mxu0 0.0
    %116 = vmatprep.subr.mxu0 0.0
    %117 = vmatpush1.msra.mxu0 0.0
    %118 = vmatprep.subr.mxu0 0.0
    %119 = vmatpush1.msra.mxu0 0.0
    %120 = vmatprep.subr.mxu0 0.0
    %121 = vmatpush1.msra.mxu0 0.0
    %122 = vmatprep.subr.mxu0 0.0
    %123 = vmatpush1.msra.mxu0 0.0
    %124 = vmatprep.subr.mxu0 0.0
    %125 = vmatpush1.msra.mxu0 0.0
    %126 = vmatprep.subr.mxu0 0.0
    %127 = vmatpush1.msra.mxu0 0.0
    %128 = vmatprep.subr.mxu0 0.0
    %129 = vmatpush1.msra.mxu0 0.0
    %130 = vmatprep.subr.mxu0 0.0
    %131 = vmatpush1.msra.mxu0 0.0
    %132 = vmatprep.subr.mxu0 0.0
    %133 = vmatpush1.msra.mxu0 0.0
    %134 = vmatprep.subr.mxu0 0.0
    %135 = vmatpush1.msra.mxu0 0.0
    %136 = vmatprep.subr.mxu0 0.0
    %137 = vmatpush1.msra.mxu0 0.0
    %138 = vmatprep.subr.mxu0 0.0
    %139 = vmatpush1.msra.mxu0 0.0
    %140 = vmatprep.subr.mxu0 0.0
    %141 = vmatpush1.msra.mxu0 0.0
    %142 = vmatprep.subr.mxu0 0.0
    %143 = vmatpush1.msra.mxu0 0.0
    %144 = vmatprep.subr.mxu0 0.0
    %145 = vmatpush1.msra.mxu0 0.0
    %146 = vmatprep.subr.mxu0 0.0
    %147 = vmatpush1.msra.mxu0 0.0
    %148 = vmatprep.subr.mxu0 0.0
    %149 = vmatpush1.msra.mxu0 0.0
    %150 = vmatprep.subr.mxu0 0.0
    %151 = vmatpush1.msra.mxu0 0.0
    %152 = vmatprep.subr.mxu0 0.0
    %153 = vmatpush1.msra.mxu0 0.0
    %154 = vmatprep.subr.mxu0 0.0
    %155 = vmatpush1.msra.mxu0 0.0
    %156 = vmatprep.subr.mxu0 0.0
    %157 = vmatpush1.msra.mxu0 0.0
    %158 = vmatprep.subr.mxu0 0.0
    %159 = vmatpush1.msra.mxu0 0.0
    %160 = vmatprep.subr.mxu0 0.0
    %161 = vmatpush1.msra.mxu0 0.0
    %162 = vmatprep.mubr.f32.mxu0 0.0
    %163 = vmatmul.mubr.f32.gmra.mrb[0].mxu0 %v90
    %v164 = vpop.f32.mrb[0].mxu0
    %v165 = vadd.f32 0.0, %v164
    %v166 = vpop.f32.mrb[0].mxu0
    %167 = vmatprep.mubr.f32.mxu0 0.0
    %168 = vmatmul.mubr.f32.gmra.mrb[0].mxu0 %v93
    %v169 = vpop.f32.mrb[0].mxu0
    %v170 = vadd.f32 0.0, %v169
    %v171 = vpop.f32.mrb[0].mxu0
    %172 = vmatprep.mubr.f32.mxu0 0.0
    %173 = vmatmul.mubr.f32.gmra.mrb[0].mxu0 %v96
    %v174 = vpop.f32.mrb[0].mxu0
    %v175 = vadd.f32 0.0, %v174
    %v176 = vpop.f32.mrb[0].mxu0
    %177 = vdwg.mxu0
    %vm178 = vcmask 130048
    %v180 = vsel %vm178, %v71, 0
    %v183 = vsel %vm178, %v72, 0
    %v186 = vsel %vm178, %v73, 0
    %188 = vmatprep.subr.mxu0 0.0
    %189 = vmatpush1.msra.mxu0 %v82
    %190 = vmatprep.subr.mxu0 0.0
    %191 = vmatpush1.msra.mxu0 %v83
    %192 = vmatprep.subr.mxu0 0.0
    %193 = vmatpush1.msra.mxu0 0.0
    %194 = vmatprep.subr.mxu0 0.0
    %195 = vmatpush1.msra.mxu0 0.0
    %196 = vmatprep.subr.mxu0 0.0
    %197 = vmatpush1.msra.mxu0 0.0
    %198 = vmatprep.subr.mxu0 0.0
    %199 = vmatpush1.msra.mxu0 0.0
    %200 = vmatprep.subr.mxu0 0.0
    %201 = vmatpush1.msra.mxu0 0.0
    %202 = vmatprep.subr.mxu0 0.0
    %203 = vmatpush1.msra.mxu0 0.0
    %204 = vmatprep.subr.mxu0 0.0
    %205 = vmatpush1.msra.mxu0 0.0
    %206 = vmatprep.subr.mxu0 0.0
    %207 = vmatpush1.msra.mxu0 0.0
    %208 = vmatprep.subr.mxu0 0.0
    %209 = vmatpush1.msra.mxu0 0.0
    %210 = vmatprep.subr.mxu0 0.0
    %211 = vmatpush1.msra.mxu0 0.0
    %212 = vmatprep.subr.mxu0 0.0
    %213 = vmatpush1.msra.mxu0 0.0
    %214 = vmatprep.subr.mxu0 0.0
    %215 = vmatpush1.msra.mxu0 0.0
    %216 = vmatprep.subr.mxu0 0.0
    %217 = vmatpush1.msra.mxu0 0.0
    %218 = vmatprep.subr.mxu0 0.0
    %219 = vmatpush1.msra.mxu0 0.0
    %220 = vmatprep.subr.mxu0 0.0
    %221 = vmatpush1.msra.mxu0 0.0
    %222 = vmatprep.subr.mxu0 0.0
    %223 = vmatpush1.msra.mxu0 0.0
    %224 = vmatprep.subr.mxu0 0.0
    %225 = vmatpush1.msra.mxu0 0.0
    %226 = vmatprep.subr.mxu0 0.0
    %227 = vmatpush1.msra.mxu0 0.0
    %228 = vmatprep.subr.mxu0 0.0
    %229 = vmatpush1.msra.mxu0 0.0
    %230 = vmatprep.subr.mxu0 0.0
    %231 = vmatpush1.msra.mxu0 0.0
    %232 = vmatprep.subr.mxu0 0.0
    %233 = vmatpush1.msra.mxu0 0.0
    %234 = vmatprep.subr.mxu0 0.0
    %235 = vmatpush1.msra.mxu0 0.0
    %236 = vmatprep.subr.mxu0 0.0
    %237 = vmatpush1.msra.mxu0 0.0
    %238 = vmatprep.subr.mxu0 0.0
    %239 = vmatpush1.msra.mxu0 0.0
    %240 = vmatprep.subr.mxu0 0.0
    %241 = vmatpush1.msra.mxu0 0.0
    %242 = vmatprep.subr.mxu0 0.0
    %243 = vmatpush1.msra.mxu0 0.0
    %244 = vmatprep.subr.mxu0 0.0
    %245 = vmatpush1.msra.mxu0 0.0
    %246 = vmatprep.subr.mxu0 0.0
    %247 = vmatpush1.msra.mxu0 0.0
    %248 = vmatprep.subr.mxu0 0.0
    %249 = vmatpush1.msra.mxu0 0.0
    %250 = vmatprep.subr.mxu0 0.0
    %251 = vmatpush1.msra.mxu0 0.0
    %252 = vmatprep.mubr.f32.mxu0 0.0
    %253 = vmatmul.mubr.f32.gmra.mrb[0].mxu0 %v180
    %v254 = vpop.f32.mrb[0].mxu0
    %v255 = vadd.f32 %v165, %v254
    %v256 = vpop.f32.mrb[0].mxu0
    %257 = vmatprep.mubr.f32.mxu0 0.0
    %258 = vmatmul.mubr.f32.gmra.mrb[0].mxu0 %v183
    %v259 = vpop.f32.mrb[0].mxu0
    %v260 = vadd.f32 %v170, %v259
    %v261 = vpop.f32.mrb[0].mxu0
    %262 = vmatprep.mubr.f32.mxu0 0.0
    %263 = vmatmul.mubr.f32.gmra.mrb[0].mxu0 %v186
    %v264 = vpop.f32.mrb[0].mxu0
    %v265 = vadd.f32 %v175, %v264
    %v266 = vpop.f32.mrb[0].mxu0
    %267 = vdwg.mxu0
    %v268 = vlaneseq
    %v269 = vshrl.u32 %v268, 7
    %v270 = vsub.s32 0, %v269
    %v271 = vrot.slane %v77, %v270
    %v272 = vadd.f32 %v255, %v271
    %v273 = vadd.f32 %v260, %v271
    %v274 = vadd.f32 %v265, %v271
    %v275 = vmul.f32 %v272, 0.01
    %v276 = vmul.f32 %v273, 0.01
    %v277 = vmul.f32 %v274, 0.01
    %v278 = vmax.f32 %v272, %v275
    %v279 = vmax.f32 %v273, %v276
    %v280 = vmax.f32 %v274, %v277
    %v281 = vld [vmem:[%s4] sm:$0xff]
    %v282 = vld [vmem:[%s4 + $0x8] sm:$0xff]
    %v283 = vld [vmem:[%s4 + $0x10] sm:$0xff]
    %v284 = vld [vmem:[%s4 + $0x18] sm:$0xff]
    %v285 = vld [vmem:[%s4 + $0x20] sm:$0xff]
    %v286 = vld [vmem:[%s4 + $0x28] sm:$0xff]
    %v287 = vld [vmem:[%s4 + $0x30] sm:$0xff]
    %v288 = vld [vmem:[%s4 + $0x38] sm:$0xff]
    %v289 = vlaneseq
    %v290 = vshrl.u32 %v289, 7
    %v291 = vsub.s32 0, %v290
    %v292 = vrot.slane %v78, %v291
    %vm293 = vcmask 523264
    %v295 = vsel %vm293, %v278, 0
    %v298 = vsel %vm293, %v279, 0
    %v301 = vsel %vm293, %v280, 0
    %303 = vmatprep.subr.mxu0 0.0
    %304 = vmatpush1.msra.mxu0 %v281
    %305 = vmatprep.subr.mxu0 0.0
    %306 = vmatpush1.msra.mxu0 %v282
    %307 = vmatprep.subr.mxu0 0.0
    %308 = vmatpush1.msra.mxu0 %v283
    %309 = vmatprep.subr.mxu0 0.0
    %310 = vmatpush1.msra.mxu0 %v284
    %311 = vmatprep.subr.mxu0 0.0
    %312 = vmatpush1.msra.mxu0 %v285
    %313 = vmatprep.subr.mxu0 0.0
    %314 = vmatpush1.msra.mxu0 %v286
    %315 = vmatprep.subr.mxu0 0.0
    %316 = vmatpush1.msra.mxu0 %v287
    %317 = vmatprep.subr.mxu0 0.0
    %318 = vmatpush1.msra.mxu0 %v288
    %319 = vmatprep.subr.mxu0 0.0
    %320 = vmatpush1.msra.mxu0 0.0
    %321 = vmatprep.subr.mxu0 0.0
    %322 = vmatpush1.msra.mxu0 0.0
    %323 = vmatprep.subr.mxu0 0.0
    %324 = vmatpush1.msra.mxu0 0.0
    %325 = vmatprep.subr.mxu0 0.0
    %326 = vmatpush1.msra.mxu0 0.0
    %327 = vmatprep.subr.mxu0 0.0
    %328 = vmatpush1.msra.mxu0 0.0
    %329 = vmatprep.subr.mxu0 0.0
    %330 = vmatpush1.msra.mxu0 0.0
    %331 = vmatprep.subr.mxu0 0.0
    %332 = vmatpush1.msra.mxu0 0.0
    %333 = vmatprep.subr.mxu0 0.0
    %334 = vmatpush1.msra.mxu0 0.0
    %335 = vmatprep.subr.mxu0 0.0
    %336 = vmatpush1.msra.mxu0 0.0
    %337 = vmatprep.subr.mxu0 0.0
    %338 = vmatpush1.msra.mxu0 0.0
    %339 = vmatprep.subr.mxu0 0.0
    %340 = vmatpush1.msra.mxu0 0.0
    %341 = vmatprep.subr.mxu0 0.0
    %342 = vmatpush1.msra.mxu0 0.0
    %343 = vmatprep.subr.mxu0 0.0
    %344 = vmatpush1.msra.mxu0 0.0
    %345 = vmatprep.subr.mxu0 0.0
    %346 = vmatpush1.msra.mxu0 0.0
    %347 = vmatprep.subr.mxu0 0.0
    %348 = vmatpush1.msra.mxu0 0.0
    %349 = vmatprep.subr.mxu0 0.0
    %350 = vmatpush1.msra.mxu0 0.0
    %351 = vmatprep.subr.mxu0 0.0
    %352 = vmatpush1.msra.mxu0 0.0
    %353 = vmatprep.subr.mxu0 0.0
    %354 = vmatpush1.msra.mxu0 0.0
    %355 = vmatprep.subr.mxu0 0.0
    %356 = vmatpush1.msra.mxu0 0.0
    %357 = vmatprep.subr.mxu0 0.0
    %358 = vmatpush1.msra.mxu0 0.0
    %359 = vmatprep.subr.mxu0 0.0
    %360 = vmatpush1.msra.mxu0 0.0
    %361 = vmatprep.subr.mxu0 0.0
    %362 = vmatpush1.msra.mxu0 0.0
    %363 = vmatprep.subr.mxu0 0.0
    %364 = vmatpush1.msra.mxu0 0.0
    %365 = vmatprep.subr.mxu0 0.0
    %366 = vmatpush1.msra.mxu0 0.0
    %367 = vmatprep.mubr.f32.mxu0 0.0
    %368 = vmatmul.mubr.f32.gmra.mrb[0].mxu0 %v295
    %v369 = vpop.f32.mrb[0].mxu0
    %v370 = vadd.f32 %v292, %v369
    %v371 = vpop.f32.mrb[0].mxu0
    %372 = vmatprep.mubr.f32.mxu0 0.0
    %373 = vmatmul.mubr.f32.gmra.mrb[0].mxu0 %v298
    %v374 = vpop.f32.mrb[0].mxu0
    %v375 = vadd.f32 %v292, %v374
    %v376 = vpop.f32.mrb[0].mxu0
    %377 = vmatprep.mubr.f32.mxu0 0.0
    %378 = vmatmul.mubr.f32.gmra.mrb[0].mxu0 %v301
    %v379 = vpop.f32.mrb[0].mxu0
    %v380 = vadd.f32 %v292, %v379
    %v381 = vpop.f32.mrb[0].mxu0
    %382 = vdwg.mxu0
    %v383 = vld [vmem:[%s5] sm:$0xff]
    %v384 = vld [vmem:[%s5 + $0x8] sm:$0xff]
    %v385 = vld [vmem:[%s5 + $0x10] sm:$0xff]
    %v386 = vld [vmem:[%s5 + $0x18] sm:$0xff]
    %v387 = vlaneseq
    %v388 = vshrl.u32 %v387, 7
    %v389 = vsub.s32 0, %v388
    %v390 = vrot.slane %v79, %v389
    %v392 = vsel %vm88, %v370, 0
    %394 = vmatprep.subr.mxu0 0.0
    %395 = vmatpush1.msra.mxu0 %v383
    %396 = vmatprep.subr.mxu0 0.0
    %397 = vmatpush1.msra.mxu0 %v384
    %398 = vmatprep.subr.mxu0 0.0
    %399 = vmatpush1.msra.mxu0 %v385
    %400 = vmatprep.subr.mxu0 0.0
    %401 = vmatpush1.msra.mxu0 %v386
    %402 = vmatprep.subr.mxu0 0.0
    %403 = vmatpush1.msra.mxu0 0.0
    %404 = vmatprep.subr.mxu0 0.0
    %405 = vmatpush1.msra.mxu0 0.0
    %406 = vmatprep.subr.mxu0 0.0
    %407 = vmatpush1.msra.mxu0 0.0
    %408 = vmatprep.subr.mxu0 0.0
    %409 = vmatpush1.msra.mxu0 0.0
    %410 = vmatprep.subr.mxu0 0.0
    %411 = vmatpush1.msra.mxu0 0.0
    %412 = vmatprep.subr.mxu0 0.0
    %413 = vmatpush1.msra.mxu0 0.0
    %414 = vmatprep.subr.mxu0 0.0
    %415 = vmatpush1.msra.mxu0 0.0
    %416 = vmatprep.subr.mxu0 0.0
    %417 = vmatpush1.msra.mxu0 0.0
    %418 = vmatprep.subr.mxu0 0.0
    %419 = vmatpush1.msra.mxu0 0.0
    %420 = vmatprep.subr.mxu0 0.0
    %421 = vmatpush1.msra.mxu0 0.0
    %422 = vmatprep.subr.mxu0 0.0
    %423 = vmatpush1.msra.mxu0 0.0
    %424 = vmatprep.subr.mxu0 0.0
    %425 = vmatpush1.msra.mxu0 0.0
    %426 = vmatprep.subr.mxu0 0.0
    %427 = vmatpush1.msra.mxu0 0.0
    %428 = vmatprep.subr.mxu0 0.0
    %429 = vmatpush1.msra.mxu0 0.0
    %430 = vmatprep.subr.mxu0 0.0
    %431 = vmatpush1.msra.mxu0 0.0
    %432 = vmatprep.subr.mxu0 0.0
    %433 = vmatpush1.msra.mxu0 0.0
    %434 = vmatprep.subr.mxu0 0.0
    %435 = vmatpush1.msra.mxu0 0.0
    %436 = vmatprep.subr.mxu0 0.0
    %437 = vmatpush1.msra.mxu0 0.0
    %438 = vmatprep.subr.mxu0 0.0
    %439 = vmatpush1.msra.mxu0 0.0
    %440 = vmatprep.subr.mxu0 0.0
    %441 = vmatpush1.msra.mxu0 0.0
    %442 = vmatprep.subr.mxu0 0.0
    %443 = vmatpush1.msra.mxu0 0.0
    %444 = vmatprep.subr.mxu0 0.0
    %445 = vmatpush1.msra.mxu0 0.0
    %446 = vmatprep.subr.mxu0 0.0
    %447 = vmatpush1.msra.mxu0 0.0
    %448 = vmatprep.subr.mxu0 0.0
    %449 = vmatpush1.msra.mxu0 0.0
    %450 = vmatprep.subr.mxu0 0.0
    %451 = vmatpush1.msra.mxu0 0.0
    %452 = vmatprep.subr.mxu0 0.0
    %453 = vmatpush1.msra.mxu0 0.0
    %454 = vmatprep.subr.mxu0 0.0
    %455 = vmatpush1.msra.mxu0 0.0
    %456 = vmatprep.subr.mxu0 0.0
    %457 = vmatpush1.msra.mxu0 0.0
    %458 = vmatprep.mubr.f32.mxu0 0.0
    %459 = vmatmul.mubr.f32.gmra.mrb[0].mxu0 %v392
    %v460 = vpop.f32.mrb[0].mxu0
    %v461 = vadd.f32 %v390, %v460
    %v462 = vpop.f32.mrb[0].mxu0
    %463 = vdwg.mxu0
    %s464 = scalar_lea.vmem %s5, 32
    %v465 = vld [vmem:[%s464] sm:$0xff]
    %v466 = vld [vmem:[%s464 + $0x8] sm:$0xff]
    %v467 = vld [vmem:[%s464 + $0x10] sm:$0xff]
    %v468 = vld [vmem:[%s464 + $0x18] sm:$0xff]
    %v469 = vlaneseq
    %v470 = vshrl.u32 %v469, 7
    %v471 = vsub.s32 0, %v470
    %v472 = vrot.slane %v80, %v471
    %v474 = vsel %vm88, %v375, 0
    %v477 = vsel %vm88, %v380, 0
    %479 = vmatprep.subr.mxu0 0.0
    %480 = vmatpush1.msra.mxu0 %v465
    %481 = vmatprep.subr.mxu0 0.0
    %482 = vmatpush1.msra.mxu0 %v466
    %483 = vmatprep.subr.mxu0 0.0
    %484 = vmatpush1.msra.mxu0 %v467
    %485 = vmatprep.subr.mxu0 0.0
    %486 = vmatpush1.msra.mxu0 %v468
    %487 = vmatprep.subr.mxu0 0.0
    %488 = vmatpush1.msra.mxu0 0.0
    %489 = vmatprep.subr.mxu0 0.0
    %490 = vmatpush1.msra.mxu0 0.0
    %491 = vmatprep.subr.mxu0 0.0
    %492 = vmatpush1.msra.mxu0 0.0
    %493 = vmatprep.subr.mxu0 0.0
    %494 = vmatpush1.msra.mxu0 0.0
    %495 = vmatprep.subr.mxu0 0.0
    %496 = vmatpush1.msra.mxu0 0.0
    %497 = vmatprep.subr.mxu0 0.0
    %498 = vmatpush1.msra.mxu0 0.0
    %499 = vmatprep.subr.mxu0 0.0
    %500 = vmatpush1.msra.mxu0 0.0
    %501 = vmatprep.subr.mxu0 0.0
    %502 = vmatpush1.msra.mxu0 0.0
    %503 = vmatprep.subr.mxu0 0.0
    %504 = vmatpush1.msra.mxu0 0.0
    %505 = vmatprep.subr.mxu0 0.0
    %506 = vmatpush1.msra.mxu0 0.0
    %507 = vmatprep.subr.mxu0 0.0
    %508 = vmatpush1.msra.mxu0 0.0
    %509 = vmatprep.subr.mxu0 0.0
    %510 = vmatpush1.msra.mxu0 0.0
    %511 = vmatprep.subr.mxu0 0.0
    %512 = vmatpush1.msra.mxu0 0.0
    %513 = vmatprep.subr.mxu0 0.0
    %514 = vmatpush1.msra.mxu0 0.0
    %515 = vmatprep.subr.mxu0 0.0
    %516 = vmatpush1.msra.mxu0 0.0
    %517 = vmatprep.subr.mxu0 0.0
    %518 = vmatpush1.msra.mxu0 0.0
    %519 = vmatprep.subr.mxu0 0.0
    %520 = vmatpush1.msra.mxu0 0.0
    %521 = vmatprep.subr.mxu0 0.0
    %522 = vmatpush1.msra.mxu0 0.0
    %523 = vmatprep.subr.mxu0 0.0
    %524 = vmatpush1.msra.mxu0 0.0
    %525 = vmatprep.subr.mxu0 0.0
    %526 = vmatpush1.msra.mxu0 0.0
    %527 = vmatprep.subr.mxu0 0.0
    %528 = vmatpush1.msra.mxu0 0.0
    %529 = vmatprep.subr.mxu0 0.0
    %530 = vmatpush1.msra.mxu0 0.0
    %531 = vmatprep.subr.mxu0 0.0
    %532 = vmatpush1.msra.mxu0 0.0
    %533 = vmatprep.subr.mxu0 0.0
    %534 = vmatpush1.msra.mxu0 0.0
    %535 = vmatprep.subr.mxu0 0.0
    %536 = vmatpush1.msra.mxu0 0.0
    %537 = vmatprep.subr.mxu0 0.0
    %538 = vmatpush1.msra.mxu0 0.0
    %539 = vmatprep.subr.mxu0 0.0
    %540 = vmatpush1.msra.mxu0 0.0
    %541 = vmatprep.subr.mxu0 0.0
    %542 = vmatpush1.msra.mxu0 0.0
    %543 = vmatprep.mubr.f32.mxu0 0.0
    %544 = vmatmul.mubr.f32.gmra.mrb[0].mxu0 %v474
    %v545 = vpop.f32.mrb[0].mxu0
    %v546 = vadd.f32 %v472, %v545
    %v547 = vpop.f32.mrb[0].mxu0
    %548 = vmatprep.mubr.f32.mxu0 0.0
    %549 = vmatmul.mubr.f32.gmra.mrb[0].mxu0 %v477
    %v550 = vpop.f32.mrb[0].mxu0
    %v551 = vadd.f32 %v472, %v550
    %v552 = vpop.f32.mrb[0].mxu0
    %553 = vdwg.mxu0
    %s554 = scalar_lea.vmem %s5, 64
    %v555 = vld [vmem:[%s554] sm:$0xff]
    %v556 = vadd.f32 %v461, %v546
    %v557 = vmax.f32 %v556, 0.0
    %559 = vset.pattern.permute.xlu0 0
    %560 = vperm.xlu0 %559, %v81
    %v561 = vpop.permute.xlu0 %560
    %v564 = vsel %vm88, %v555, 0
    %v567 = vsel %vm88, %v557, 0
    %569 = vmatprep.subr.mxu0 0.0
    %570 = vmatpush1.xpose.msra.mxu0 %v567
    %571 = vmatprep.subr.mxu0 0.0
    %572 = vmatpush1.xpose.msra.mxu0 0.0
    %573 = vmatprep.subr.mxu0 0.0
    %574 = vmatpush1.xpose.msra.mxu0 0.0
    %575 = vmatprep.subr.mxu0 0.0
    %576 = vmatpush1.xpose.msra.mxu0 0.0
    %577 = vmatprep.subr.mxu0 0.0
    %578 = vmatpush1.xpose.msra.mxu0 0.0
    %579 = vmatprep.subr.mxu0 0.0
    %580 = vmatpush1.xpose.msra.mxu0 0.0
    %581 = vmatprep.subr.mxu0 0.0
    %582 = vmatpush1.xpose.msra.mxu0 0.0
    %583 = vmatprep.subr.mxu0 0.0
    %584 = vmatpush1.xpose.msra.mxu0 0.0
    %585 = vmatprep.subr.mxu0 0.0
    %586 = vmatpush1.xpose.msra.mxu0 0.0
    %587 = vmatprep.subr.mxu0 0.0
    %588 = vmatpush1.xpose.msra.mxu0 0.0
    %589 = vmatprep.subr.mxu0 0.0
    %590 = vmatpush1.xpose.msra.mxu0 0.0
    %591 = vmatprep.subr.mxu0 0.0
    %592 = vmatpush1.xpose.msra.mxu0 0.0
    %593 = vmatprep.subr.mxu0 0.0
    %594 = vmatpush1.xpose.msra.mxu0 0.0
    %595 = vmatprep.subr.mxu0 0.0
    %596 = vmatpush1.xpose.msra.mxu0 0.0
    %597 = vmatprep.subr.mxu0 0.0
    %598 = vmatpush1.xpose.msra.mxu0 0.0
    %599 = vmatprep.subr.mxu0 0.0
    %600 = vmatpush1.xpose.msra.mxu0 0.0
    %601 = vmatprep.subr.mxu0 0.0
    %602 = vmatpush1.xpose.msra.mxu0 0.0
    %603 = vmatprep.subr.mxu0 0.0
    %604 = vmatpush1.xpose.msra.mxu0 0.0
    %605 = vmatprep.subr.mxu0 0.0
    %606 = vmatpush1.xpose.msra.mxu0 0.0
    %607 = vmatprep.subr.mxu0 0.0
    %608 = vmatpush1.xpose.msra.mxu0 0.0
    %609 = vmatprep.subr.mxu0 0.0
    %610 = vmatpush1.xpose.msra.mxu0 0.0
    %611 = vmatprep.subr.mxu0 0.0
    %612 = vmatpush1.xpose.msra.mxu0 0.0
    %613 = vmatprep.subr.mxu0 0.0
    %614 = vmatpush1.xpose.msra.mxu0 0.0
    %615 = vmatprep.subr.mxu0 0.0
    %616 = vmatpush1.xpose.msra.mxu0 0.0
    %617 = vmatprep.subr.mxu0 0.0
    %618 = vmatpush1.xpose.msra.mxu0 0.0
    %619 = vmatprep.subr.mxu0 0.0
    %620 = vmatpush1.xpose.msra.mxu0 0.0
    %621 = vmatprep.subr.mxu0 0.0
    %622 = vmatpush1.xpose.msra.mxu0 0.0
    %623 = vmatprep.subr.mxu0 0.0
    %624 = vmatpush1.xpose.msra.mxu0 0.0
    %625 = vmatprep.subr.mxu0 0.0
    %626 = vmatpush1.xpose.msra.mxu0 0.0
    %627 = vmatprep.subr.mxu0 0.0
    %628 = vmatpush1.xpose.msra.mxu0 0.0
    %629 = vmatprep.subr.mxu0 0.0
    %630 = vmatpush1.xpose.msra.mxu0 0.0
    %631 = vmatprep.subr.mxu0 0.0
    %632 = vmatpush1.xpose.msra.mxu0 0.0
    %633 = vmatprep.mubr.f32.mxu0 0.0
    %634 = vmatmul.mubr.f32.gmra.mrb[0].mxu0 %v564
    %v635 = vpop.f32.mrb[0].mxu0
    %v636 = vadd.f32 %v561, %v635
    %v637 = vpop.f32.mrb[0].mxu0
    %638 = vdwg.mxu0
    %vm639 = vcmask 57344
    %640 = vst.msk [vmem:[#allocation8] sm:$0x1] %vm639, %v636
    %v641 = vmax.f32 %v636, 0.0
    %v642 = vand.u32 2147483647, %v636
    %v643 = vsub.f32 0.0, %v642
    %v644 = vmul.f32 %v643, 1.442695
    %v645 = vpow.pop %v644
    %v646 = vadd.f32 %v645, 1.0
    %v647 = vlog2.pop %v646
    %v648 = vmul.f32 %v647, 0.6931472
    %v649 = vadd.f32 %v641, %v648
    %v650 = vmul.f32 %v649, 0.9
    %v651 = vadd.f32 %v650, 0.1
    %vm652 = vcmask 58369
    %653 = vst.msk [vmem:[#allocation8 + $0x1] sm:$0x2] %vm652, %v651
    %v654 = vadd.f32 %v461, %v551
    %v655 = vmax.f32 %v654, 0.0
    %v657 = vsel %vm88, %v655, 0
    %659 = vmatprep.subr.mxu0 0.0
    %660 = vmatpush1.xpose.msra.mxu0 %v657
    %661 = vmatprep.subr.mxu0 0.0
    %662 = vmatpush1.xpose.msra.mxu0 0.0
    %663 = vmatprep.subr.mxu0 0.0
    %664 = vmatpush1.xpose.msra.mxu0 0.0
    %665 = vmatprep.subr.mxu0 0.0
    %666 = vmatpush1.xpose.msra.mxu0 0.0
    %667 = vmatprep.subr.mxu0 0.0
    %668 = vmatpush1.xpose.msra.mxu0 0.0
    %669 = vmatprep.subr.mxu0 0.0
    %670 = vmatpush1.xpose.msra.mxu0 0.0
    %671 = vmatprep.subr.mxu0 0.0
    %672 = vmatpush1.xpose.msra.mxu0 0.0
    %673 = vmatprep.subr.mxu0 0.0
    %674 = vmatpush1.xpose.msra.mxu0 0.0
    %675 = vmatprep.subr.mxu0 0.0
    %676 = vmatpush1.xpose.msra.mxu0 0.0
    %677 = vmatprep.subr.mxu0 0.0
    %678 = vmatpush1.xpose.msra.mxu0 0.0
    %679 = vmatprep.subr.mxu0 0.0
    %680 = vmatpush1.xpose.msra.mxu0 0.0
    %681 = vmatprep.subr.mxu0 0.0
    %682 = vmatpush1.xpose.msra.mxu0 0.0
    %683 = vmatprep.subr.mxu0 0.0
    %684 = vmatpush1.xpose.msra.mxu0 0.0
    %685 = vmatprep.subr.mxu0 0.0
    %686 = vmatpush1.xpose.msra.mxu0 0.0
    %687 = vmatprep.subr.mxu0 0.0
    %688 = vmatpush1.xpose.msra.mxu0 0.0
    %689 = vmatprep.subr.mxu0 0.0
    %690 = vmatpush1.xpose.msra.mxu0 0.0
    %691 = vmatprep.subr.mxu0 0.0
    %692 = vmatpush1.xpose.msra.mxu0 0.0
    %693 = vmatprep.subr.mxu0 0.0
    %694 = vmatpush1.xpose.msra.mxu0 0.0
    %695 = vmatprep.subr.mxu0 0.0
    %696 = vmatpush1.xpose.msra.mxu0 0.0
    %697 = vmatprep.subr.mxu0 0.0
    %698 = vmatpush1.xpose.msra.mxu0 0.0
    %699 = vmatprep.subr.mxu0 0.0
    %700 = vmatpush1.xpose.msra.mxu0 0.0
    %701 = vmatprep.subr.mxu0 0.0
    %702 = vmatpush1.xpose.msra.mxu0 0.0
    %703 = vmatprep.subr.mxu0 0.0
    %704 = vmatpush1.xpose.msra.mxu0 0.0
    %705 = vmatprep.subr.mxu0 0.0
    %706 = vmatpush1.xpose.msra.mxu0 0.0
    %707 = vmatprep.subr.mxu0 0.0
    %708 = vmatpush1.xpose.msra.mxu0 0.0
    %709 = vmatprep.subr.mxu0 0.0
    %710 = vmatpush1.xpose.msra.mxu0 0.0
    %711 = vmatprep.subr.mxu0 0.0
    %712 = vmatpush1.xpose.msra.mxu0 0.0
    %713 = vmatprep.subr.mxu0 0.0
    %714 = vmatpush1.xpose.msra.mxu0 0.0
    %715 = vmatprep.subr.mxu0 0.0
    %716 = vmatpush1.xpose.msra.mxu0 0.0
    %717 = vmatprep.subr.mxu0 0.0
    %718 = vmatpush1.xpose.msra.mxu0 0.0
    %719 = vmatprep.subr.mxu0 0.0
    %720 = vmatpush1.xpose.msra.mxu0 0.0
    %721 = vmatprep.subr.mxu0 0.0
    %722 = vmatpush1.xpose.msra.mxu0 0.0
    %723 = vmatprep.mubr.f32.mxu0 0.0
    %724 = vmatmul.mubr.f32.gmra.mrb[0].mxu0 %v564
    %v725 = vpop.f32.mrb[0].mxu0
    %v726 = vadd.f32 %v561, %v725
    %v727 = vpop.f32.mrb[0].mxu0
    %728 = vdwg.mxu0
    %729 = vst.msk [vmem:[#allocation8 + $0x1] sm:$0x1] %vm639, %v726
    %v730 = vmax.f32 %v726, 0.0
    %v731 = vand.u32 2147483647, %v726
    %v732 = vsub.f32 0.0, %v731
    %v733 = vmul.f32 %v732, 1.442695
    %v734 = vpow.pop %v733
    %v735 = vadd.f32 %v734, 1.0
    %v736 = vlog2.pop %v735
    %v737 = vmul.f32 %v736, 0.6931472
    %v738 = vadd.f32 %v730, %v737
    %v739 = vmul.f32 %v738, 0.9
    %v740 = vadd.f32 %v739, 0.1
    %741 = vst.msk [vmem:[#allocation8 + $0x2] sm:$0x2] %vm652, %v740
    // Predicated region
    $region46: #{tpu_custom_call.1} parent=1 // pred_check
      _
    $region47: #{tpu_custom_call.1} parent=1 // pred_check_branch
      %743 = sbr.rel (0) target = $region49
    $region48: #{tpu_custom_call.1} parent=1 // pred_region
      %s745 = ssub.s32 64, 64
      %746 = vsyncadd [#allocation4], %s745
      %s748 = sshll.u32 [#allocation8], 4
      %s749 = int_to_ptr.vmem [resolvable:$true] %s748
      %751 = dma.vmem_to_hbm [thread:$0]  %s749, 64, %s8, [#allocation4]
    $region49: #{tpu_custom_call.1} parent=1 // pred_fallthru
      _
    // Predicated region
    $region50: #{tpu_custom_call.1} parent=1 // pred_check
      _
    $region51: #{tpu_custom_call.1} parent=1 // pred_check_branch
      %753 = sbr.rel (0) target = $region53
    $region52: #{tpu_custom_call.1} parent=1 // pred_region
      %754 = dma.done [#allocation4], 64
    $region53: #{tpu_custom_call.1} parent=1 // pred_fallthru
      _
    %755 = vsyncpa [#allocation3], 1
    %756 = vsyncpa [#allocation6], 1
    %757 = vsyncpa [#allocation4], 1

</llo_original>
